<compile_context>
chip_gen: v7x
topology: tpu7x:2x2x1
jax: 0.10.0
libtpu: 0.0.40
codegen_flags: <defaults>
</compile_context>

<pallas_src>
import jax
import jax.numpy as jnp
from jax import lax
from jax.experimental import pallas as pl
from jax.experimental.pallas import tpu as pltpu

LANE = 128


def _round_up(x, m):
    return ((x + m - 1) // m) * m


def qnet_kernel(idx_ref, table_ref, bias_ref, w2_ref, w3_ref, out_ref):
    TB = idx_ref.shape[0]
    S_pad, H = table_ref.shape
    A_pad = out_ref.shape[1]

    # Layer 1: one-hot encode the (pre-clamped) indices and hit the MXU with
    # the pre-folded relu(W1 + b1) table.  one_hot @ table == table[idx].
    idx_col = idx_ref[...]                                      # (TB, 1) int32
    lanes = lax.broadcasted_iota(jnp.int32, (TB, S_pad), 1)     # (TB, S_pad)
    one_hot = (idx_col == lanes).astype(jnp.bfloat16)
    h1 = jnp.dot(one_hot, table_ref[...],
                 preferred_element_type=jnp.float32)            # (TB, H) f32

    b2 = bias_ref[0:1, :H]        # (1, H)     f32
    b3 = bias_ref[1:2, :A_pad]    # (1, A_pad) f32

    # Layer 2: bf16 MXU matmul with f32 accumulation; bias + ReLU in f32 (VPU).
    h2 = jnp.dot(h1.astype(jnp.bfloat16), w2_ref[...],
                 preferred_element_type=jnp.float32) + b2
    h2 = jnp.maximum(h2, 0.0)

    # Output layer into the lane-padded (A_pad) slab.
    out_ref[...] = jnp.dot(h2.astype(jnp.bfloat16), w3_ref[...],
                           preferred_element_type=jnp.float32) + b3


def qnet_prepare_params(w1, b1, w2, b2, w3, b3):
    """Once-per-weight-update preprocessing, hoisted out of the forward path."""
    S, H = w1.shape
    A = w3.shape[1]
    S_pad = _round_up(S, LANE)
    A_pad = _round_up(A, LANE)
    WB = max(H, A_pad)

    # relu(one_hot @ W1 + b1) == one_hot @ relu(W1 + b1): fold bias + ReLU here.
    table = (jnp.zeros((S_pad, H), jnp.float32)
             .at[:S, :].set(jnp.maximum(
                 w1.astype(jnp.float32) + b1.astype(jnp.float32)[None, :], 0.0))
             .astype(jnp.bfloat16))
    w2_bf16 = w2.astype(jnp.bfloat16)
    w3_pad = (jnp.zeros((H, A_pad), jnp.bfloat16)
              .at[:, :A].set(w3.astype(jnp.bfloat16)))
    # Both remaining biases fused into one f32 slab -> a single DMA.
    bias_slab = (jnp.zeros((2, WB), jnp.float32)
                 .at[0, :H].set(b2.astype(jnp.float32))
                 .at[1, :A].set(b3.astype(jnp.float32)))
    return dict(table=table, bias=bias_slab, w2=w2_bf16, w3=w3_pad,
                state_dim=S, action_dim=A)


def _default_num_batch_blocks():
    # Dual-TC v7x: two "parallel" batch blocks; single-TC v5e/v6e: one step.
    try:
        kind = jax.devices()[0].device_kind.lower()
    except Exception:
        return 1
    return 2 if "7" in kind else 1


def qnet_forward(idx, params, *, num_batch_blocks=None):
    """idx: (B,) integer observation indices. params: qnet_prepare_params()."""
    table, bias = params["table"], params["bias"]
    w2, w3 = params["w2"], params["w3"]
    S, A = params["state_dim"], params["action_dim"]
    S_pad, H = table.shape
    A_pad = w3.shape[1]
    WB = bias.shape[1]

    if num_batch_blocks is None:
        num_batch_blocks = _default_num_batch_blocks()

    B = idx.shape[0]
    align = 8 * num_batch_blocks             # sublane-aligned per-block tiles
    B_pad = _round_up(B, align)
    TB = B_pad // num_batch_blocks

    # Vectorized clamp (torch F.one_hot would raise on OOB; we clamp instead).
    # Padded batch rows use index 0; their outputs are sliced off below.
    idx_col = (jnp.zeros((B_pad, 1), jnp.int32)
               .at[:B, 0].set(jnp.clip(idx.astype(jnp.int32), 0, S - 1)))

    grid_spec = pltpu.PrefetchScalarGridSpec(
        num_scalar_prefetch=0,
        grid=(num_batch_blocks,),
        in_specs=[
            pl.BlockSpec((TB, 1), lambda i: (i, 0)),        # obs index column
            pl.BlockSpec((S_pad, H), lambda i: (0, 0)),     # relu(W1+b1) table
            pl.BlockSpec((2, WB), lambda i: (0, 0)),        # fused b2/b3 slab
            pl.BlockSpec((H, H), lambda i: (0, 0)),         # W2 (VMEM-resident)
            pl.BlockSpec((H, A_pad), lambda i: (0, 0)),     # W3, lane-padded
        ],
        out_specs=pl.BlockSpec((TB, A_pad), lambda i: (i, 0)),
    )
    # Constant-index-map weight specs could also take pipeline_mode=pl.Buffered(1)
    # to drop their second pipeline buffer (~100 KiB); left at the default since
    # total VMEM footprint (<1 MiB) is nowhere near the limit on any generation.

    out_padded = pl.pallas_call(
        qnet_kernel,
        out_shape=jax.ShapeDtypeStruct((B_pad, A_pad), jnp.float32),
        grid_spec=grid_spec,
        compiler_params=pltpu.CompilerParams(
            dimension_semantics=("parallel",),  # batch blocks -> both TCs on v7x
        ),
    )(idx_col, table, bias, w2, w3)

    return out_padded[:B, :A]


def qnet_reference_f32(idx, w1, b1, w2, b2, w3, b3):
    """Pure-f32 reference matching the PyTorch module."""
    x = jax.nn.one_hot(idx.astype(jnp.int32), w1.shape[0], dtype=jnp.float32)
    x = jnp.maximum(x @ w1 + b1, 0.0)
    x = jnp.maximum(x @ w2 + b2, 0.0)
    return x @ w3 + b3


def qnet_reference_matched(idx, w1, b1, w2, b2, w3, b3):
    """Reference with the same precision policy as the kernel (bf16 MXU, f32 acc)."""
    h1 = jnp.maximum(w1[idx.astype(jnp.int32)] + b1, 0.0).astype(jnp.bfloat16)
    h2 = jnp.maximum(
        jnp.dot(h1, w2.astype(jnp.bfloat16),
                preferred_element_type=jnp.float32) + b2, 0.0)
    return jnp.dot(h2.astype(jnp.bfloat16), w3.astype(jnp.bfloat16),
                   preferred_element_type=jnp.float32) + b3


if __name__ == "__main__":
    # Cliff-walk style dims: 4x12 grid -> 48 states, hidden 128, 4 actions.
    # Batch sized like a DQN replay batch so the kernel amortizes fixed overhead.
    B, STATE_DIM, HIDDEN_DIM, ACTION_DIM = 256, 48, 128, 4

    key = jax.random.PRNGKey(0)
    k_idx, k1, k2, k3, k4, k5, k6 = jax.random.split(key, 7)

    # PyTorch-Linear-style uniform init, stored pre-transposed (in, out).
    def init_linear(kw, kb, fan_in, fan_out):
        bound = 1.0 / jnp.sqrt(jnp.float32(fan_in))
        w = jax.random.uniform(kw, (fan_in, fan_out), jnp.float32, -bound, bound)
        b = jax.random.uniform(kb, (fan_out,), jnp.float32, -bound, bound)
        return w, b

    w1, b1 = init_linear(k1, k2, STATE_DIM, HIDDEN_DIM)
    w2, b2 = init_linear(k3, k4, HIDDEN_DIM, HIDDEN_DIM)
    w3, b3 = init_linear(k5, k6, HIDDEN_DIM, ACTION_DIM)

    idx = jax.random.randint(k_idx, (B,), 0, STATE_DIM, dtype=jnp.int32)

    # Weight preprocessing runs once per parameter update, not per forward.
    params = jax.tree_util.tree_map(jax.block_until_ready,
                                    qnet_prepare_params(w1, b1, w2, b2, w3, b3))

    # Per-step forward: only index padding/clamp + the pallas_call, under jit.
    forward = jax.jit(lambda obs: qnet_forward(obs, params))
    out = jax.block_until_ready(forward(idx))
    assert out.shape == (B, ACTION_DIM)

    ref32 = qnet_reference_f32(idx, w1, b1, w2, b2, w3, b3)
    refbf = qnet_reference_matched(idx, w1, b1, w2, b2, w3, b3)
    assert jnp.allclose(out, refbf, atol=5e-3, rtol=5e-3), \
        "mismatch vs matched-precision reference"
    assert jnp.allclose(out, ref32, atol=2e-2, rtol=2e-2), \
        "mismatch vs f32 reference"

    print("KERNEL_OK")
</pallas_src>

<mosaic_0001>
module attributes {stable_mosaic.version = 11 : i64} {
  func.func @qnet_kernel(%arg0: i32, %arg1: memref<256x1xi32, #tpu.memory_space<vmem>>, %arg2: memref<128x128xbf16, #tpu.memory_space<vmem>>, %arg3: memref<2x128xf32, #tpu.memory_space<vmem>>, %arg4: memref<128x128xbf16, #tpu.memory_space<vmem>>, %arg5: memref<128x128xbf16, #tpu.memory_space<vmem>>, %arg6: memref<256x128xf32, #tpu.memory_space<vmem>>) attributes {dimension_semantics = [#tpu.dimension_semantics<parallel>], iteration_bounds = array<i64: 1>, scalar_prefetch = 0 : i64, scratch_operands = 0 : i64, tpu.core_type = #tpu.core_type<tc>, window_params = [{transform_indices = @transform_0, window_bounds = array<i64: 256, 1>}, {pipeline_mode = #tpu.pipeline_mode<synchronous>, transform_indices = @transform_1, window_bounds = array<i64: 128, 128>}, {pipeline_mode = #tpu.pipeline_mode<synchronous>, transform_indices = @transform_2, window_bounds = array<i64: 2, 128>}, {pipeline_mode = #tpu.pipeline_mode<synchronous>, transform_indices = @transform_3, window_bounds = array<i64: 128, 128>}, {pipeline_mode = #tpu.pipeline_mode<synchronous>, transform_indices = @transform_4, window_bounds = array<i64: 128, 128>}, {transform_indices = @transform_5, window_bounds = array<i64: 256, 128>}]} {
    %c0 = arith.constant 0 : index
    %c0_0 = arith.constant 0 : index
    %0 = vector.load %arg1[%c0, %c0_0] : memref<256x1xi32, #tpu.memory_space<vmem>>, vector<256x1xi32>
    %1 = tpu.iota {dimensions = array<i32: 1>} : vector<256x128xi32>
    %2 = vector.broadcast %0 : vector<256x1xi32> to vector<256x128xi32>
    %3 = arith.cmpi eq, %2, %1 : vector<256x128xi32>
    %4 = arith.extui %3 : vector<256x128xi1> to vector<256x128xi32>
    %5 = arith.sitofp %4 : vector<256x128xi32> to vector<256x128xf32>
    %6 = arith.truncf %5 : vector<256x128xf32> to vector<256x128xbf16>
    %c0_1 = arith.constant 0 : index
    %c0_2 = arith.constant 0 : index
    %7 = vector.load %arg2[%c0_1, %c0_2] : memref<128x128xbf16, #tpu.memory_space<vmem>>, vector<128x128xbf16>
    %cst = arith.constant dense<0.000000e+00> : vector<256x128xf32>
    %8 = tpu.matmul %6, %7, %cst {dimension_numbers = #tpu.dot_dimension_numbers<[1], [0], [0], [1], [0, 0, 1, 1], [], []>} : vector<256x128xbf16>, vector<128x128xbf16>, vector<256x128xf32> -> vector<256x128xf32>
    %c0_3 = arith.constant 0 : index
    %c0_4 = arith.constant 0 : index
    %9 = vector.load %arg3[%c0_3, %c0_4] : memref<2x128xf32, #tpu.memory_space<vmem>>, vector<1x128xf32>
    %c1 = arith.constant 1 : index
    %c0_5 = arith.constant 0 : index
    %10 = vector.load %arg3[%c1, %c0_5] : memref<2x128xf32, #tpu.memory_space<vmem>>, vector<1x128xf32>
    %11 = arith.truncf %8 : vector<256x128xf32> to vector<256x128xbf16>
    %c0_6 = arith.constant 0 : index
    %c0_7 = arith.constant 0 : index
    %12 = vector.load %arg4[%c0_6, %c0_7] : memref<128x128xbf16, #tpu.memory_space<vmem>>, vector<128x128xbf16>
    %cst_8 = arith.constant dense<0.000000e+00> : vector<256x128xf32>
    %13 = tpu.matmul %11, %12, %cst_8 {dimension_numbers = #tpu.dot_dimension_numbers<[1], [0], [0], [1], [0, 0, 1, 1], [], []>} : vector<256x128xbf16>, vector<128x128xbf16>, vector<256x128xf32> -> vector<256x128xf32>
    %14 = vector.broadcast %9 : vector<1x128xf32> to vector<256x128xf32>
    %15 = arith.addf %13, %14 : vector<256x128xf32>
    %cst_9 = arith.constant 0.000000e+00 : f32
    %16 = vector.broadcast %cst_9 : f32 to vector<256x128xf32>
    %17 = arith.maximumf %15, %16 : vector<256x128xf32>
    %18 = arith.truncf %17 : vector<256x128xf32> to vector<256x128xbf16>
    %c0_10 = arith.constant 0 : index
    %c0_11 = arith.constant 0 : index
    %19 = vector.load %arg5[%c0_10, %c0_11] : memref<128x128xbf16, #tpu.memory_space<vmem>>, vector<128x128xbf16>
    %cst_12 = arith.constant dense<0.000000e+00> : vector<256x128xf32>
    %20 = tpu.matmul %18, %19, %cst_12 {dimension_numbers = #tpu.dot_dimension_numbers<[1], [0], [0], [1], [0, 0, 1, 1], [], []>} : vector<256x128xbf16>, vector<128x128xbf16>, vector<256x128xf32> -> vector<256x128xf32>
    %21 = vector.broadcast %10 : vector<1x128xf32> to vector<256x128xf32>
    %22 = arith.addf %20, %21 : vector<256x128xf32>
    %c0_13 = arith.constant 0 : index
    %c0_14 = arith.constant 0 : index
    %23 = vector.load %arg6[%c0_13, %c0_14] : memref<256x128xf32, #tpu.memory_space<vmem>>, vector<256x128xf32>
    tpu.vector_store %arg6[%c0_13, %c0_14], %22 {strides = array<i32>} : memref<256x128xf32, #tpu.memory_space<vmem>>, vector<256x128xf32>,
    return
  }
  func.func @transform_0(%arg0: i32) -> (i32, i32) {
    %c0_i32 = arith.constant 0 : i32
    %c0_i32_0 = arith.constant 0 : i32
    return %arg0, %c0_i32 : i32, i32
  }
  func.func @transform_1(%arg0: i32) -> (i32, i32) {
    %c0_i32 = arith.constant 0 : i32
    %c0_i32_0 = arith.constant 0 : i32
    %c0_i32_1 = arith.constant 0 : i32
    return %c0_i32, %c0_i32_0 : i32, i32
  }
  func.func @transform_2(%arg0: i32) -> (i32, i32) {
    %c0_i32 = arith.constant 0 : i32
    %c0_i32_0 = arith.constant 0 : i32
    %c0_i32_1 = arith.constant 0 : i32
    return %c0_i32, %c0_i32_0 : i32, i32
  }
  func.func @transform_3(%arg0: i32) -> (i32, i32) {
    %c0_i32 = arith.constant 0 : i32
    %c0_i32_0 = arith.constant 0 : i32
    %c0_i32_1 = arith.constant 0 : i32
    return %c0_i32, %c0_i32_0 : i32, i32
  }
  func.func @transform_4(%arg0: i32) -> (i32, i32) {
    %c0_i32 = arith.constant 0 : i32
    %c0_i32_0 = arith.constant 0 : i32
    %c0_i32_1 = arith.constant 0 : i32
    return %c0_i32, %c0_i32_0 : i32, i32
  }
  func.func @transform_5(%arg0: i32) -> (i32, i32) {
    %c0_i32 = arith.constant 0 : i32
    %c0_i32_0 = arith.constant 0 : i32
    return %arg0, %c0_i32 : i32, i32
  }
}

</mosaic_0001>

<llo_original>
// kernel: _lambda_.1
$region0: #{_lambda_.1}
  #allocation0 [shape = 'u32[]', space=smem, size = 0x4, offset = 0x4, fixed_abs, tag = 'smem constant byte address 0x4 - core index']
  #allocation1 [shape = 'u32[144,128]{1,0:T(1,128)}', space=vmem, size = 0x12000, scoped, tag = 'internal scratch']
  %s0 = inlined_call_operand.vmem [shape: s32[256,1], index: 0, kind: input, shape index: {}]
  %s1 = inlined_call_operand.vmem [shape: bf16[128,128], index: 1, kind: input, shape index: {}]
  %s2 = inlined_call_operand.vmem [shape: f32[2,128], index: 2, kind: input, shape index: {}]
  %s3 = inlined_call_operand.vmem [shape: bf16[128,128], index: 3, kind: input, shape index: {}]
  %s4 = inlined_call_operand.vmem [shape: bf16[128,128], index: 4, kind: input, shape index: {}]
  %s5 = inlined_call_operand.vmem [shape: f32[256,128], index: 5, kind: output, shape index: {}]
  %s6 = sld [smem:[#allocation0]]
  $region30: #{_lambda_.1} parent=0
    _
  %s8 = ssub.s32 1, %s6
  %s9 = scalar_select 0, %s8, %s6
  // Predicated region
  $region2: #{_lambda_.1} parent=0 // pred_check
    _
  $region3: #{_lambda_.1} parent=0 // pred_check_branch
    %11 = sbr.rel (0) target = $region5
  $region4: #{_lambda_.1} parent=0 // pred_region
    _
  $region5: #{_lambda_.1} parent=0 // pred_fallthru
    _
  // Predicated region
  $region6: #{_lambda_.1} parent=0 // pred_check
    _
  $region7: #{_lambda_.1} parent=0 // pred_check_branch
    %13 = sbr.rel (0) target = $region9
  $region8: #{_lambda_.1} parent=0 // pred_region
    _
  $region9: #{_lambda_.1} parent=0 // pred_fallthru
    _
  // Predicated region
  $region10: #{_lambda_.1} parent=0 // pred_check
    _
  $region11: #{_lambda_.1} parent=0 // pred_check_branch
    %15 = sbr.rel (0) target = $region13
  $region12: #{_lambda_.1} parent=0 // pred_region
    _
  $region13: #{_lambda_.1} parent=0 // pred_fallthru
    _
  // Predicated region
  $region14: #{_lambda_.1} parent=0 // pred_check
    _
  $region15: #{_lambda_.1} parent=0 // pred_check_branch
    %17 = sbr.rel (0) target = $region17
  $region16: #{_lambda_.1} parent=0 // pred_region
    _
  $region17: #{_lambda_.1} parent=0 // pred_fallthru
    _
  // Predicated region
  $region18: #{_lambda_.1} parent=0 // pred_check
    _
  $region19: #{_lambda_.1} parent=0 // pred_check_branch
    %19 = sbr.rel (0) target = $region21
  $region20: #{_lambda_.1} parent=0 // pred_region
    _
  $region21: #{_lambda_.1} parent=0 // pred_fallthru
    _
  %v21 = vld [vmem:[%s0] sm:$0xff]
  %v22 = vld [vmem:[%s0 + $0x8] sm:$0xff]
  %v23 = vld [vmem:[%s0 + $0x10] sm:$0xff]
  %v24 = vld [vmem:[%s0 + $0x18] sm:$0xff]
  %v25 = vld [vmem:[%s0 + $0x20] sm:$0xff]
  %v26 = vld [vmem:[%s0 + $0x28] sm:$0xff]
  %v27 = vld [vmem:[%s0 + $0x30] sm:$0xff]
  %v28 = vld [vmem:[%s0 + $0x38] sm:$0xff]
  %v29 = vld [vmem:[%s0 + $0x40] sm:$0xff]
  %v30 = vld [vmem:[%s0 + $0x48] sm:$0xff]
  %v31 = vld [vmem:[%s0 + $0x50] sm:$0xff]
  %v32 = vld [vmem:[%s0 + $0x58] sm:$0xff]
  %v33 = vld [vmem:[%s0 + $0x60] sm:$0xff]
  %v34 = vld [vmem:[%s0 + $0x68] sm:$0xff]
  %v35 = vld [vmem:[%s0 + $0x70] sm:$0xff]
  %v36 = vld [vmem:[%s0 + $0x78] sm:$0xff]
  %v37 = vld [vmem:[%s0 + $0x80] sm:$0xff]
  %v38 = vld [vmem:[%s0 + $0x88] sm:$0xff]
  %v39 = vld [vmem:[%s0 + $0x90] sm:$0xff]
  %v40 = vld [vmem:[%s0 + $0x98] sm:$0xff]
  %v41 = vld [vmem:[%s0 + $0xa0] sm:$0xff]
  %v42 = vld [vmem:[%s0 + $0xa8] sm:$0xff]
  %v43 = vld [vmem:[%s0 + $0xb0] sm:$0xff]
  %v44 = vld [vmem:[%s0 + $0xb8] sm:$0xff]
  %v45 = vld [vmem:[%s0 + $0xc0] sm:$0xff]
  %v46 = vld [vmem:[%s0 + $0xc8] sm:$0xff]
  %v47 = vld [vmem:[%s0 + $0xd0] sm:$0xff]
  %v48 = vld [vmem:[%s0 + $0xd8] sm:$0xff]
  %v49 = vld [vmem:[%s0 + $0xe0] sm:$0xff]
  %v50 = vld [vmem:[%s0 + $0xe8] sm:$0xff]
  %v51 = vld [vmem:[%s0 + $0xf0] sm:$0xff]
  %v52 = vld [vmem:[%s0 + $0xf8] sm:$0xff]
  %v53 = vlaneseq
  %v54 = vand.u32 %v53, 127
  %55 = vset.pattern.permute.xlu0 0
  %56 = vperm.xlu0 %55, %v21
  %v57 = vpop.permute.xlu0 %56
  %58 = vset.pattern.permute.xlu0 0
  %59 = vperm.xlu0 %58, %v22
  %v60 = vpop.permute.xlu0 %59
  %61 = vset.pattern.permute.xlu0 0
  %62 = vperm.xlu0 %61, %v23
  %v63 = vpop.permute.xlu0 %62
  %64 = vset.pattern.permute.xlu0 0
  %65 = vperm.xlu0 %64, %v24
  %v66 = vpop.permute.xlu0 %65
  %67 = vset.pattern.permute.xlu0 0
  %68 = vperm.xlu0 %67, %v25
  %v69 = vpop.permute.xlu0 %68
  %70 = vset.pattern.permute.xlu0 0
  %71 = vperm.xlu0 %70, %v26
  %v72 = vpop.permute.xlu0 %71
  %73 = vset.pattern.permute.xlu0 0
  %74 = vperm.xlu0 %73, %v27
  %v75 = vpop.permute.xlu0 %74
  %76 = vset.pattern.permute.xlu0 0
  %77 = vperm.xlu0 %76, %v28
  %v78 = vpop.permute.xlu0 %77
  %79 = vset.pattern.permute.xlu0 0
  %80 = vperm.xlu0 %79, %v29
  %v81 = vpop.permute.xlu0 %80
  %82 = vset.pattern.permute.xlu0 0
  %83 = vperm.xlu0 %82, %v30
  %v84 = vpop.permute.xlu0 %83
  %85 = vset.pattern.permute.xlu0 0
  %86 = vperm.xlu0 %85, %v31
  %v87 = vpop.permute.xlu0 %86
  %88 = vset.pattern.permute.xlu0 0
  %89 = vperm.xlu0 %88, %v32
  %v90 = vpop.permute.xlu0 %89
  %91 = vset.pattern.permute.xlu0 0
  %92 = vperm.xlu0 %91, %v33
  %v93 = vpop.permute.xlu0 %92
  %94 = vset.pattern.permute.xlu0 0
  %95 = vperm.xlu0 %94, %v34
  %v96 = vpop.permute.xlu0 %95
  %97 = vset.pattern.permute.xlu0 0
  %98 = vperm.xlu0 %97, %v35
  %v99 = vpop.permute.xlu0 %98
  %100 = vset.pattern.permute.xlu0 0
  %101 = vperm.xlu0 %100, %v36
  %v102 = vpop.permute.xlu0 %101
  %103 = vset.pattern.permute.xlu0 0
  %104 = vperm.xlu0 %103, %v37
  %v105 = vpop.permute.xlu0 %104
  %106 = vset.pattern.permute.xlu0 0
  %107 = vperm.xlu0 %106, %v38
  %v108 = vpop.permute.xlu0 %107
  %109 = vset.pattern.permute.xlu0 0
  %110 = vperm.xlu0 %109, %v39
  %v111 = vpop.permute.xlu0 %110
  %112 = vset.pattern.permute.xlu0 0
  %113 = vperm.xlu0 %112, %v40
  %v114 = vpop.permute.xlu0 %113
  %115 = vset.pattern.permute.xlu0 0
  %116 = vperm.xlu0 %115, %v41
  %v117 = vpop.permute.xlu0 %116
  %118 = vset.pattern.permute.xlu0 0
  %119 = vperm.xlu0 %118, %v42
  %v120 = vpop.permute.xlu0 %119
  %121 = vset.pattern.permute.xlu0 0
  %122 = vperm.xlu0 %121, %v43
  %v123 = vpop.permute.xlu0 %122
  %124 = vset.pattern.permute.xlu0 0
  %125 = vperm.xlu0 %124, %v44
  %v126 = vpop.permute.xlu0 %125
  %127 = vset.pattern.permute.xlu0 0
  %128 = vperm.xlu0 %127, %v45
  %v129 = vpop.permute.xlu0 %128
  %130 = vset.pattern.permute.xlu0 0
  %131 = vperm.xlu0 %130, %v46
  %v132 = vpop.permute.xlu0 %131
  %133 = vset.pattern.permute.xlu0 0
  %134 = vperm.xlu0 %133, %v47
  %v135 = vpop.permute.xlu0 %134
  %136 = vset.pattern.permute.xlu0 0
  %137 = vperm.xlu0 %136, %v48
  %v138 = vpop.permute.xlu0 %137
  %139 = vset.pattern.permute.xlu0 0
  %140 = vperm.xlu0 %139, %v49
  %v141 = vpop.permute.xlu0 %140
  %142 = vset.pattern.permute.xlu0 0
  %143 = vperm.xlu0 %142, %v50
  %v144 = vpop.permute.xlu0 %143
  %145 = vset.pattern.permute.xlu0 0
  %146 = vperm.xlu0 %145, %v51
  %v147 = vpop.permute.xlu0 %146
  %148 = vset.pattern.permute.xlu0 0
  %149 = vperm.xlu0 %148, %v52
  %v150 = vpop.permute.xlu0 %149
  %vm151 = vcmp.eq.s32.totalorder %v57, %v54
  %vm152 = vcmp.eq.s32.totalorder %v60, %v54
  %vm153 = vcmp.eq.s32.totalorder %v63, %v54
  %vm154 = vcmp.eq.s32.totalorder %v66, %v54
  %vm155 = vcmp.eq.s32.totalorder %v69, %v54
  %vm156 = vcmp.eq.s32.totalorder %v72, %v54
  %vm157 = vcmp.eq.s32.totalorder %v75, %v54
  %vm158 = vcmp.eq.s32.totalorder %v78, %v54
  %vm159 = vcmp.eq.s32.totalorder %v81, %v54
  %vm160 = vcmp.eq.s32.totalorder %v84, %v54
  %vm161 = vcmp.eq.s32.totalorder %v87, %v54
  %vm162 = vcmp.eq.s32.totalorder %v90, %v54
  %vm163 = vcmp.eq.s32.totalorder %v93, %v54
  %vm164 = vcmp.eq.s32.totalorder %v96, %v54
  %vm165 = vcmp.eq.s32.totalorder %v99, %v54
  %vm166 = vcmp.eq.s32.totalorder %v102, %v54
  %vm167 = vcmp.eq.s32.totalorder %v105, %v54
  %vm168 = vcmp.eq.s32.totalorder %v108, %v54
  %vm169 = vcmp.eq.s32.totalorder %v111, %v54
  %vm170 = vcmp.eq.s32.totalorder %v114, %v54
  %vm171 = vcmp.eq.s32.totalorder %v117, %v54
  %vm172 = vcmp.eq.s32.totalorder %v120, %v54
  %vm173 = vcmp.eq.s32.totalorder %v123, %v54
  %vm174 = vcmp.eq.s32.totalorder %v126, %v54
  %vm175 = vcmp.eq.s32.totalorder %v129, %v54
  %vm176 = vcmp.eq.s32.totalorder %v132, %v54
  %vm177 = vcmp.eq.s32.totalorder %v135, %v54
  %vm178 = vcmp.eq.s32.totalorder %v138, %v54
  %vm179 = vcmp.eq.s32.totalorder %v141, %v54
  %vm180 = vcmp.eq.s32.totalorder %v144, %v54
  %vm181 = vcmp.eq.s32.totalorder %v147, %v54
  %vm182 = vcmp.eq.s32.totalorder %v150, %v54
  %v183 = vsel %vm151, 1, 0
  %v184 = vsel %vm152, 1, 0
  %v185 = vsel %vm153, 1, 0
  %v186 = vsel %vm154, 1, 0
  %v187 = vsel %vm155, 1, 0
  %v188 = vsel %vm156, 1, 0
  %v189 = vsel %vm157, 1, 0
  %v190 = vsel %vm158, 1, 0
  %v191 = vsel %vm159, 1, 0
  %v192 = vsel %vm160, 1, 0
  %v193 = vsel %vm161, 1, 0
  %v194 = vsel %vm162, 1, 0
  %v195 = vsel %vm163, 1, 0
  %v196 = vsel %vm164, 1, 0
  %v197 = vsel %vm165, 1, 0
  %v198 = vsel %vm166, 1, 0
  %v199 = vsel %vm167, 1, 0
  %v200 = vsel %vm168, 1, 0
  %v201 = vsel %vm169, 1, 0
  %v202 = vsel %vm170, 1, 0
  %v203 = vsel %vm171, 1, 0
  %v204 = vsel %vm172, 1, 0
  %v205 = vsel %vm173, 1, 0
  %v206 = vsel %vm174, 1, 0
  %v207 = vsel %vm175, 1, 0
  %v208 = vsel %vm176, 1, 0
  %v209 = vsel %vm177, 1, 0
  %v210 = vsel %vm178, 1, 0
  %v211 = vsel %vm179, 1, 0
  %v212 = vsel %vm180, 1, 0
  %v213 = vsel %vm181, 1, 0
  %v214 = vsel %vm182, 1, 0
  %v215 = vcvt.s32.f32 %v183
  %v216 = vcvt.s32.f32 %v184
  %v217 = vcvt.s32.f32 %v185
  %v218 = vcvt.s32.f32 %v186
  %v219 = vcvt.s32.f32 %v187
  %v220 = vcvt.s32.f32 %v188
  %v221 = vcvt.s32.f32 %v189
  %v222 = vcvt.s32.f32 %v190
  %v223 = vcvt.s32.f32 %v191
  %v224 = vcvt.s32.f32 %v192
  %v225 = vcvt.s32.f32 %v193
  %v226 = vcvt.s32.f32 %v194
  %v227 = vcvt.s32.f32 %v195
  %v228 = vcvt.s32.f32 %v196
  %v229 = vcvt.s32.f32 %v197
  %v230 = vcvt.s32.f32 %v198
  %v231 = vcvt.s32.f32 %v199
  %v232 = vcvt.s32.f32 %v200
  %v233 = vcvt.s32.f32 %v201
  %v234 = vcvt.s32.f32 %v202
  %v235 = vcvt.s32.f32 %v203
  %v236 = vcvt.s32.f32 %v204
  %v237 = vcvt.s32.f32 %v205
  %v238 = vcvt.s32.f32 %v206
  %v239 = vcvt.s32.f32 %v207
  %v240 = vcvt.s32.f32 %v208
  %v241 = vcvt.s32.f32 %v209
  %v242 = vcvt.s32.f32 %v210
  %v243 = vcvt.s32.f32 %v211
  %v244 = vcvt.s32.f32 %v212
  %v245 = vcvt.s32.f32 %v213
  %v246 = vcvt.s32.f32 %v214
  %v247 = vpack.c.bf16 %v216, %v215
  %v248 = vpack.c.bf16 %v218, %v217
  %v249 = vpack.c.bf16 %v220, %v219
  %v250 = vpack.c.bf16 %v222, %v221
  %v251 = vpack.c.bf16 %v224, %v223
  %v252 = vpack.c.bf16 %v226, %v225
  %v253 = vpack.c.bf16 %v228, %v227
  %v254 = vpack.c.bf16 %v230, %v229
  %v255 = vpack.c.bf16 %v232, %v231
  %v256 = vpack.c.bf16 %v234, %v233
  %v257 = vpack.c.bf16 %v236, %v235
  %v258 = vpack.c.bf16 %v238, %v237
  %v259 = vpack.c.bf16 %v240, %v239
  %v260 = vpack.c.bf16 %v242, %v241
  %v261 = vpack.c.bf16 %v244, %v243
  %v262 = vpack.c.bf16 %v246, %v245
  %v263 = vld [vmem:[%s1] sm:$0xf]
  %v264 = vld [vmem:[%s1 + $0x4] sm:$0xf]
  %v265 = vld [vmem:[%s1 + $0x8] sm:$0xf]
  %v266 = vld [vmem:[%s1 + $0xc] sm:$0xf]
  %v267 = vld [vmem:[%s1 + $0x10] sm:$0xf]
  %v268 = vld [vmem:[%s1 + $0x14] sm:$0xf]
  %v269 = vld [vmem:[%s1 + $0x18] sm:$0xf]
  %v270 = vld [vmem:[%s1 + $0x1c] sm:$0xf]
  %v271 = vld [vmem:[%s1 + $0x20] sm:$0xf]
  %v272 = vld [vmem:[%s1 + $0x24] sm:$0xf]
  %v273 = vld [vmem:[%s1 + $0x28] sm:$0xf]
  %v274 = vld [vmem:[%s1 + $0x2c] sm:$0xf]
  %v275 = vld [vmem:[%s1 + $0x30] sm:$0xf]
  %v276 = vld [vmem:[%s1 + $0x34] sm:$0xf]
  %v277 = vld [vmem:[%s1 + $0x38] sm:$0xf]
  %v278 = vld [vmem:[%s1 + $0x3c] sm:$0xf]
  %v295 = vunpack.c.l.b16 %v263
  %v296 = vunpack.c.l.b16 %v264
  %v297 = vunpack.c.l.b16 %v265
  %v298 = vunpack.c.l.b16 %v266
  %v299 = vunpack.c.l.b16 %v267
  %v300 = vunpack.c.l.b16 %v268
  %v301 = vunpack.c.l.b16 %v269
  %v302 = vunpack.c.l.b16 %v270
  %v303 = vunpack.c.l.b16 %v271
  %v304 = vunpack.c.l.b16 %v272
  %v305 = vunpack.c.l.b16 %v273
  %v306 = vunpack.c.l.b16 %v274
  %v307 = vunpack.c.l.b16 %v275
  %v308 = vunpack.c.l.b16 %v276
  %v309 = vunpack.c.l.b16 %v277
  %v310 = vunpack.c.l.b16 %v278
  %v311 = vpack.c.b16 %v296, %v295
  %v312 = vpack.c.b16 %v298, %v297
  %v313 = vpack.c.b16 %v300, %v299
  %v314 = vpack.c.b16 %v302, %v301
  %v315 = vpack.c.b16 %v304, %v303
  %v316 = vpack.c.b16 %v306, %v305
  %v317 = vpack.c.b16 %v308, %v307
  %v318 = vpack.c.b16 %v310, %v309
  %327 = vmatprep.subr.bf16.mxu0 0
  %328 = vmatpush1.bf16.msra.mxu0 %v311
  %329 = vmatprep.subr.bf16.mxu0 0
  %330 = vmatpush1.bf16.msra.mxu0 %v312
  %331 = vmatprep.subr.bf16.mxu0 0
  %332 = vmatpush1.bf16.msra.mxu0 %v313
  %333 = vmatprep.subr.bf16.mxu0 0
  %334 = vmatpush1.bf16.msra.mxu0 %v314
  %335 = vmatprep.subr.bf16.mxu0 0
  %336 = vmatpush1.bf16.msra.mxu0 %v315
  %337 = vmatprep.subr.bf16.mxu0 0
  %338 = vmatpush1.bf16.msra.mxu0 %v316
  %339 = vmatprep.subr.bf16.mxu0 0
  %340 = vmatpush1.bf16.msra.mxu0 %v317
  %341 = vmatprep.subr.bf16.mxu0 0
  %342 = vmatpush1.bf16.msra.mxu0 %v318
  %343 = vmatprep.subr.bf16.mxu0 0
  %344 = vmatpush1.bf16.msra.mxu0 0
  %345 = vmatprep.subr.bf16.mxu0 0
  %346 = vmatpush1.bf16.msra.mxu0 0
  %347 = vmatprep.subr.bf16.mxu0 0
  %348 = vmatpush1.bf16.msra.mxu0 0
  %349 = vmatprep.subr.bf16.mxu0 0
  %350 = vmatpush1.bf16.msra.mxu0 0
  %351 = vmatprep.subr.bf16.mxu0 0
  %352 = vmatpush1.bf16.msra.mxu0 0
  %353 = vmatprep.subr.bf16.mxu0 0
  %354 = vmatpush1.bf16.msra.mxu0 0
  %355 = vmatprep.subr.bf16.mxu0 0
  %356 = vmatpush1.bf16.msra.mxu0 0
  %357 = vmatprep.subr.bf16.mxu0 0
  %358 = vmatpush1.bf16.msra.mxu0 0
  %359 = vmatprep.mubr.bf16.mxu0 0
  %360 = vmatmul.mubr.bf16.gmra.mrb[0].mxu0 %v247
  %v361 = vpop.f32.mrb[0].mxu0
  %v362 = vadd.f32 0.0, %v361
  %v363 = vpop.f32.mrb[0].mxu0
  %v364 = vpop.f32.mrb[0].mxu0
  %v365 = vadd.f32 0.0, %v364
  %v366 = vpop.f32.mrb[0].mxu0
  %367 = vmatprep.mubr.bf16.mxu0 0
  %368 = vmatmul.mubr.bf16.gmra.mrb[0].mxu0 %v248
  %v369 = vpop.f32.mrb[0].mxu0
  %v370 = vadd.f32 0.0, %v369
  %v371 = vpop.f32.mrb[0].mxu0
  %v372 = vpop.f32.mrb[0].mxu0
  %v373 = vadd.f32 0.0, %v372
  %v374 = vpop.f32.mrb[0].mxu0
  %375 = vmatprep.mubr.bf16.mxu0 0
  %376 = vmatmul.mubr.bf16.gmra.mrb[0].mxu0 %v249
  %v377 = vpop.f32.mrb[0].mxu0
  %v378 = vadd.f32 0.0, %v377
  %v379 = vpop.f32.mrb[0].mxu0
  %v380 = vpop.f32.mrb[0].mxu0
  %v381 = vadd.f32 0.0, %v380
  %v382 = vpop.f32.mrb[0].mxu0
  %383 = vmatprep.mubr.bf16.mxu0 0
  %384 = vmatmul.mubr.bf16.gmra.mrb[0].mxu0 %v250
  %v385 = vpop.f32.mrb[0].mxu0
  %v386 = vadd.f32 0.0, %v385
  %v387 = vpop.f32.mrb[0].mxu0
  %v388 = vpop.f32.mrb[0].mxu0
  %v389 = vadd.f32 0.0, %v388
  %v390 = vpop.f32.mrb[0].mxu0
  %391 = vmatprep.mubr.bf16.mxu0 0
  %392 = vmatmul.mubr.bf16.gmra.mrb[0].mxu0 %v251
  %v393 = vpop.f32.mrb[0].mxu0
  %v394 = vadd.f32 0.0, %v393
  %v395 = vpop.f32.mrb[0].mxu0
  %v396 = vpop.f32.mrb[0].mxu0
  %v397 = vadd.f32 0.0, %v396
  %v398 = vpop.f32.mrb[0].mxu0
  %399 = vmatprep.mubr.bf16.mxu0 0
  %400 = vmatmul.mubr.bf16.gmra.mrb[0].mxu0 %v252
  %v401 = vpop.f32.mrb[0].mxu0
  %v402 = vadd.f32 0.0, %v401
  %v403 = vpop.f32.mrb[0].mxu0
  %v404 = vpop.f32.mrb[0].mxu0
  %v405 = vadd.f32 0.0, %v404
  %v406 = vpop.f32.mrb[0].mxu0
  %407 = vmatprep.mubr.bf16.mxu0 0
  %408 = vmatmul.mubr.bf16.gmra.mrb[0].mxu0 %v253
  %v409 = vpop.f32.mrb[0].mxu0
  %v410 = vadd.f32 0.0, %v409
  %v411 = vpop.f32.mrb[0].mxu0
  %v412 = vpop.f32.mrb[0].mxu0
  %v413 = vadd.f32 0.0, %v412
  %v414 = vpop.f32.mrb[0].mxu0
  %415 = vmatprep.mubr.bf16.mxu0 0
  %416 = vmatmul.mubr.bf16.gmra.mrb[0].mxu0 %v254
  %v417 = vpop.f32.mrb[0].mxu0
  %v418 = vadd.f32 0.0, %v417
  %v419 = vpop.f32.mrb[0].mxu0
  %v420 = vpop.f32.mrb[0].mxu0
  %v421 = vadd.f32 0.0, %v420
  %v422 = vpop.f32.mrb[0].mxu0
  %423 = vmatprep.mubr.bf16.mxu0 0
  %424 = vmatmul.mubr.bf16.gmra.mrb[0].mxu0 %v255
  %v425 = vpop.f32.mrb[0].mxu0
  %v426 = vadd.f32 0.0, %v425
  %v427 = vpop.f32.mrb[0].mxu0
  %v428 = vpop.f32.mrb[0].mxu0
  %v429 = vadd.f32 0.0, %v428
  %v430 = vpop.f32.mrb[0].mxu0
  %431 = vmatprep.mubr.bf16.mxu0 0
  %432 = vmatmul.mubr.bf16.gmra.mrb[0].mxu0 %v256
  %v433 = vpop.f32.mrb[0].mxu0
  %v434 = vadd.f32 0.0, %v433
  %v435 = vpop.f32.mrb[0].mxu0
  %v436 = vpop.f32.mrb[0].mxu0
  %v437 = vadd.f32 0.0, %v436
  %v438 = vpop.f32.mrb[0].mxu0
  %439 = vmatprep.mubr.bf16.mxu0 0
  %440 = vmatmul.mubr.bf16.gmra.mrb[0].mxu0 %v257
  %v441 = vpop.f32.mrb[0].mxu0
  %v442 = vadd.f32 0.0, %v441
  %v443 = vpop.f32.mrb[0].mxu0
  %v444 = vpop.f32.mrb[0].mxu0
  %v445 = vadd.f32 0.0, %v444
  %v446 = vpop.f32.mrb[0].mxu0
  %447 = vmatprep.mubr.bf16.mxu0 0
  %448 = vmatmul.mubr.bf16.gmra.mrb[0].mxu0 %v258
  %v449 = vpop.f32.mrb[0].mxu0
  %v450 = vadd.f32 0.0, %v449
  %v451 = vpop.f32.mrb[0].mxu0
  %v452 = vpop.f32.mrb[0].mxu0
  %v453 = vadd.f32 0.0, %v452
  %v454 = vpop.f32.mrb[0].mxu0
  %455 = vmatprep.mubr.bf16.mxu0 0
  %456 = vmatmul.mubr.bf16.gmra.mrb[0].mxu0 %v259
  %v457 = vpop.f32.mrb[0].mxu0
  %v458 = vadd.f32 0.0, %v457
  %v459 = vpop.f32.mrb[0].mxu0
  %v460 = vpop.f32.mrb[0].mxu0
  %v461 = vadd.f32 0.0, %v460
  %v462 = vpop.f32.mrb[0].mxu0
  %463 = vmatprep.mubr.bf16.mxu0 0
  %464 = vmatmul.mubr.bf16.gmra.mrb[0].mxu0 %v260
  %v465 = vpop.f32.mrb[0].mxu0
  %v466 = vadd.f32 0.0, %v465
  %v467 = vpop.f32.mrb[0].mxu0
  %v468 = vpop.f32.mrb[0].mxu0
  %v469 = vadd.f32 0.0, %v468
  %v470 = vpop.f32.mrb[0].mxu0
  %471 = vmatprep.mubr.bf16.mxu0 0
  %472 = vmatmul.mubr.bf16.gmra.mrb[0].mxu0 %v261
  %v473 = vpop.f32.mrb[0].mxu0
  %v474 = vadd.f32 0.0, %v473
  %v475 = vpop.f32.mrb[0].mxu0
  %v476 = vpop.f32.mrb[0].mxu0
  %v477 = vadd.f32 0.0, %v476
  %v478 = vpop.f32.mrb[0].mxu0
  %479 = vmatprep.mubr.bf16.mxu0 0
  %480 = vmatmul.mubr.bf16.gmra.mrb[0].mxu0 %v262
  %v481 = vpop.f32.mrb[0].mxu0
  %v482 = vadd.f32 0.0, %v481
  %v483 = vpop.f32.mrb[0].mxu0
  %v484 = vpop.f32.mrb[0].mxu0
  %v485 = vadd.f32 0.0, %v484
  %v486 = vpop.f32.mrb[0].mxu0
  %487 = vdwg.mxu0
  %v488 = vld [vmem:[%s2] sm:$0x1]
  %v489 = vld [vmem:[%s2 + $0x1] sm:$0x1]
  %v490 = vpack.c.bf16 %v365, %v362
  %v491 = vpack.c.bf16 %v373, %v370
  %v492 = vpack.c.bf16 %v381, %v378
  %v493 = vpack.c.bf16 %v389, %v386
  %v494 = vpack.c.bf16 %v397, %v394
  %v495 = vpack.c.bf16 %v405, %v402
  %v496 = vpack.c.bf16 %v413, %v410
  %v497 = vpack.c.bf16 %v421, %v418
  %v498 = vpack.c.bf16 %v429, %v426
  %v499 = vpack.c.bf16 %v437, %v434
  %v500 = vpack.c.bf16 %v445, %v442
  %v501 = vpack.c.bf16 %v453, %v450
  %v502 = vpack.c.bf16 %v461, %v458
  %v503 = vpack.c.bf16 %v469, %v466
  %v504 = vpack.c.bf16 %v477, %v474
  %v505 = vpack.c.bf16 %v485, %v482
  %v506 = vld [vmem:[%s3] sm:$0xf]
  %v507 = vld [vmem:[%s3 + $0x4] sm:$0xf]
  %v508 = vld [vmem:[%s3 + $0x8] sm:$0xf]
  %v509 = vld [vmem:[%s3 + $0xc] sm:$0xf]
  %v510 = vld [vmem:[%s3 + $0x10] sm:$0xf]
  %v511 = vld [vmem:[%s3 + $0x14] sm:$0xf]
  %v512 = vld [vmem:[%s3 + $0x18] sm:$0xf]
  %v513 = vld [vmem:[%s3 + $0x1c] sm:$0xf]
  %v514 = vld [vmem:[%s3 + $0x20] sm:$0xf]
  %v515 = vld [vmem:[%s3 + $0x24] sm:$0xf]
  %v516 = vld [vmem:[%s3 + $0x28] sm:$0xf]
  %v517 = vld [vmem:[%s3 + $0x2c] sm:$0xf]
  %v518 = vld [vmem:[%s3 + $0x30] sm:$0xf]
  %v519 = vld [vmem:[%s3 + $0x34] sm:$0xf]
  %v520 = vld [vmem:[%s3 + $0x38] sm:$0xf]
  %v521 = vld [vmem:[%s3 + $0x3c] sm:$0xf]
  %v522 = vlaneseq
  %v523 = vshrl.u32 %v522, 7
  %v524 = vsub.s32 0, %v523
  %v525 = vrot.slane %v488, %v524
  %v542 = vunpack.c.l.b16 %v506
  %v543 = vunpack.c.l.b16 %v507
  %v544 = vunpack.c.l.b16 %v508
  %v545 = vunpack.c.l.b16 %v509
  %v546 = vunpack.c.l.b16 %v510
  %v547 = vunpack.c.l.b16 %v511
  %v548 = vunpack.c.l.b16 %v512
  %v549 = vunpack.c.l.b16 %v513
  %v550 = vunpack.c.l.b16 %v514
  %v551 = vunpack.c.l.b16 %v515
  %v552 = vunpack.c.l.b16 %v516
  %v553 = vunpack.c.l.b16 %v517
  %v554 = vunpack.c.l.b16 %v518
  %v555 = vunpack.c.l.b16 %v519
  %v556 = vunpack.c.l.b16 %v520
  %v557 = vunpack.c.l.b16 %v521
  %v558 = vpack.c.b16 %v543, %v542
  %v559 = vpack.c.b16 %v545, %v544
  %v560 = vpack.c.b16 %v547, %v546
  %v561 = vpack.c.b16 %v549, %v548
  %v562 = vpack.c.b16 %v551, %v550
  %v563 = vpack.c.b16 %v553, %v552
  %v564 = vpack.c.b16 %v555, %v554
  %v565 = vpack.c.b16 %v557, %v556
  %574 = vmatprep.subr.bf16.mxu0 0
  %575 = vmatpush1.bf16.msra.mxu0 %v558
  %576 = vmatprep.subr.bf16.mxu0 0
  %577 = vmatpush1.bf16.msra.mxu0 %v559
  %578 = vmatprep.subr.bf16.mxu0 0
  %579 = vmatpush1.bf16.msra.mxu0 %v560
  %580 = vmatprep.subr.bf16.mxu0 0
  %581 = vmatpush1.bf16.msra.mxu0 %v561
  %582 = vmatprep.subr.bf16.mxu0 0
  %583 = vmatpush1.bf16.msra.mxu0 %v562
  %584 = vmatprep.subr.bf16.mxu0 0
  %585 = vmatpush1.bf16.msra.mxu0 %v563
  %586 = vmatprep.subr.bf16.mxu0 0
  %587 = vmatpush1.bf16.msra.mxu0 %v564
  %588 = vmatprep.subr.bf16.mxu0 0
  %589 = vmatpush1.bf16.msra.mxu0 %v565
  %590 = vmatprep.subr.bf16.mxu0 0
  %591 = vmatpush1.bf16.msra.mxu0 0
  %592 = vmatprep.subr.bf16.mxu0 0
  %593 = vmatpush1.bf16.msra.mxu0 0
  %594 = vmatprep.subr.bf16.mxu0 0
  %595 = vmatpush1.bf16.msra.mxu0 0
  %596 = vmatprep.subr.bf16.mxu0 0
  %597 = vmatpush1.bf16.msra.mxu0 0
  %598 = vmatprep.subr.bf16.mxu0 0
  %599 = vmatpush1.bf16.msra.mxu0 0
  %600 = vmatprep.subr.bf16.mxu0 0
  %601 = vmatpush1.bf16.msra.mxu0 0
  %602 = vmatprep.subr.bf16.mxu0 0
  %603 = vmatpush1.bf16.msra.mxu0 0
  %604 = vmatprep.subr.bf16.mxu0 0
  %605 = vmatpush1.bf16.msra.mxu0 0
  %606 = vmatprep.mubr.bf16.mxu0 0
  %607 = vmatmul.mubr.bf16.gmra.mrb[0].mxu0 %v490
  %v608 = vpop.f32.mrb[0].mxu0
  %v609 = vadd.f32 %v525, %v608
  %v610 = vpop.f32.mrb[0].mxu0
  %v611 = vpop.f32.mrb[0].mxu0
  %v612 = vadd.f32 %v525, %v611
  %v613 = vpop.f32.mrb[0].mxu0
  %614 = vmatprep.mubr.bf16.mxu0 0
  %615 = vmatmul.mubr.bf16.gmra.mrb[0].mxu0 %v491
  %v616 = vpop.f32.mrb[0].mxu0
  %v617 = vadd.f32 %v525, %v616
  %v618 = vpop.f32.mrb[0].mxu0
  %v619 = vpop.f32.mrb[0].mxu0
  %v620 = vadd.f32 %v525, %v619
  %v621 = vpop.f32.mrb[0].mxu0
  %622 = vmatprep.mubr.bf16.mxu0 0
  %623 = vmatmul.mubr.bf16.gmra.mrb[0].mxu0 %v492
  %v624 = vpop.f32.mrb[0].mxu0
  %v625 = vadd.f32 %v525, %v624
  %v626 = vpop.f32.mrb[0].mxu0
  %v627 = vpop.f32.mrb[0].mxu0
  %v628 = vadd.f32 %v525, %v627
  %v629 = vpop.f32.mrb[0].mxu0
  %630 = vmatprep.mubr.bf16.mxu0 0
  %631 = vmatmul.mubr.bf16.gmra.mrb[0].mxu0 %v493
  %v632 = vpop.f32.mrb[0].mxu0
  %v633 = vadd.f32 %v525, %v632
  %v634 = vpop.f32.mrb[0].mxu0
  %v635 = vpop.f32.mrb[0].mxu0
  %v636 = vadd.f32 %v525, %v635
  %v637 = vpop.f32.mrb[0].mxu0
  %638 = vmatprep.mubr.bf16.mxu0 0
  %639 = vmatmul.mubr.bf16.gmra.mrb[0].mxu0 %v494
  %v640 = vpop.f32.mrb[0].mxu0
  %v641 = vadd.f32 %v525, %v640
  %v642 = vpop.f32.mrb[0].mxu0
  %v643 = vpop.f32.mrb[0].mxu0
  %v644 = vadd.f32 %v525, %v643
  %v645 = vpop.f32.mrb[0].mxu0
  %646 = vmatprep.mubr.bf16.mxu0 0
  %647 = vmatmul.mubr.bf16.gmra.mrb[0].mxu0 %v495
  %v648 = vpop.f32.mrb[0].mxu0
  %v649 = vadd.f32 %v525, %v648
  %v650 = vpop.f32.mrb[0].mxu0
  %v651 = vpop.f32.mrb[0].mxu0
  %v652 = vadd.f32 %v525, %v651
  %v653 = vpop.f32.mrb[0].mxu0
  %654 = vmatprep.mubr.bf16.mxu0 0
  %655 = vmatmul.mubr.bf16.gmra.mrb[0].mxu0 %v496
  %v656 = vpop.f32.mrb[0].mxu0
  %v657 = vadd.f32 %v525, %v656
  %v658 = vpop.f32.mrb[0].mxu0
  %v659 = vpop.f32.mrb[0].mxu0
  %v660 = vadd.f32 %v525, %v659
  %v661 = vpop.f32.mrb[0].mxu0
  %662 = vmatprep.mubr.bf16.mxu0 0
  %663 = vmatmul.mubr.bf16.gmra.mrb[0].mxu0 %v497
  %v664 = vpop.f32.mrb[0].mxu0
  %v665 = vadd.f32 %v525, %v664
  %v666 = vpop.f32.mrb[0].mxu0
  %v667 = vpop.f32.mrb[0].mxu0
  %v668 = vadd.f32 %v525, %v667
  %v669 = vpop.f32.mrb[0].mxu0
  %670 = vmatprep.mubr.bf16.mxu0 0
  %671 = vmatmul.mubr.bf16.gmra.mrb[0].mxu0 %v498
  %v672 = vpop.f32.mrb[0].mxu0
  %v673 = vadd.f32 %v525, %v672
  %v674 = vpop.f32.mrb[0].mxu0
  %v675 = vpop.f32.mrb[0].mxu0
  %v676 = vadd.f32 %v525, %v675
  %v677 = vpop.f32.mrb[0].mxu0
  %678 = vmatprep.mubr.bf16.mxu0 0
  %679 = vmatmul.mubr.bf16.gmra.mrb[0].mxu0 %v499
  %v680 = vpop.f32.mrb[0].mxu0
  %v681 = vadd.f32 %v525, %v680
  %v682 = vpop.f32.mrb[0].mxu0
  %v683 = vpop.f32.mrb[0].mxu0
  %v684 = vadd.f32 %v525, %v683
  %v685 = vpop.f32.mrb[0].mxu0
  %686 = vmatprep.mubr.bf16.mxu0 0
  %687 = vmatmul.mubr.bf16.gmra.mrb[0].mxu0 %v500
  %v688 = vpop.f32.mrb[0].mxu0
  %v689 = vadd.f32 %v525, %v688
  %v690 = vpop.f32.mrb[0].mxu0
  %v691 = vpop.f32.mrb[0].mxu0
  %v692 = vadd.f32 %v525, %v691
  %v693 = vpop.f32.mrb[0].mxu0
  %694 = vmatprep.mubr.bf16.mxu0 0
  %695 = vmatmul.mubr.bf16.gmra.mrb[0].mxu0 %v501
  %v696 = vpop.f32.mrb[0].mxu0
  %v697 = vadd.f32 %v525, %v696
  %v698 = vpop.f32.mrb[0].mxu0
  %v699 = vpop.f32.mrb[0].mxu0
  %v700 = vadd.f32 %v525, %v699
  %v701 = vpop.f32.mrb[0].mxu0
  %702 = vmatprep.mubr.bf16.mxu0 0
  %703 = vmatmul.mubr.bf16.gmra.mrb[0].mxu0 %v502
  %v704 = vpop.f32.mrb[0].mxu0
  %v705 = vadd.f32 %v525, %v704
  %v706 = vpop.f32.mrb[0].mxu0
  %v707 = vpop.f32.mrb[0].mxu0
  %v708 = vadd.f32 %v525, %v707
  %v709 = vpop.f32.mrb[0].mxu0
  %710 = vmatprep.mubr.bf16.mxu0 0
  %711 = vmatmul.mubr.bf16.gmra.mrb[0].mxu0 %v503
  %v712 = vpop.f32.mrb[0].mxu0
  %v713 = vadd.f32 %v525, %v712
  %v714 = vpop.f32.mrb[0].mxu0
  %v715 = vpop.f32.mrb[0].mxu0
  %v716 = vadd.f32 %v525, %v715
  %v717 = vpop.f32.mrb[0].mxu0
  %718 = vmatprep.mubr.bf16.mxu0 0
  %719 = vmatmul.mubr.bf16.gmra.mrb[0].mxu0 %v504
  %v720 = vpop.f32.mrb[0].mxu0
  %v721 = vadd.f32 %v525, %v720
  %v722 = vpop.f32.mrb[0].mxu0
  %v723 = vpop.f32.mrb[0].mxu0
  %v724 = vadd.f32 %v525, %v723
  %v725 = vpop.f32.mrb[0].mxu0
  %726 = vmatprep.mubr.bf16.mxu0 0
  %727 = vmatmul.mubr.bf16.gmra.mrb[0].mxu0 %v505
  %v728 = vpop.f32.mrb[0].mxu0
  %v729 = vadd.f32 %v525, %v728
  %v730 = vpop.f32.mrb[0].mxu0
  %v731 = vpop.f32.mrb[0].mxu0
  %v732 = vadd.f32 %v525, %v731
  %v733 = vpop.f32.mrb[0].mxu0
  %734 = vdwg.mxu0
  %v735 = vmax.f32 %v609, 0.0
  %v736 = vmax.f32 %v612, 0.0
  %v737 = vmax.f32 %v617, 0.0
  %v738 = vmax.f32 %v620, 0.0
  %v739 = vmax.f32 %v625, 0.0
  %v740 = vmax.f32 %v628, 0.0
  %v741 = vmax.f32 %v633, 0.0
  %v742 = vmax.f32 %v636, 0.0
  %v743 = vmax.f32 %v641, 0.0
  %v744 = vmax.f32 %v644, 0.0
  %v745 = vmax.f32 %v649, 0.0
  %v746 = vmax.f32 %v652, 0.0
  %v747 = vmax.f32 %v657, 0.0
  %v748 = vmax.f32 %v660, 0.0
  %v749 = vmax.f32 %v665, 0.0
  %v750 = vmax.f32 %v668, 0.0
  %v751 = vmax.f32 %v673, 0.0
  %v752 = vmax.f32 %v676, 0.0
  %v753 = vmax.f32 %v681, 0.0
  %v754 = vmax.f32 %v684, 0.0
  %v755 = vmax.f32 %v689, 0.0
  %v756 = vmax.f32 %v692, 0.0
  %v757 = vmax.f32 %v697, 0.0
  %v758 = vmax.f32 %v700, 0.0
  %v759 = vmax.f32 %v705, 0.0
  %v760 = vmax.f32 %v708, 0.0
  %v761 = vmax.f32 %v713, 0.0
  %v762 = vmax.f32 %v716, 0.0
  %v763 = vmax.f32 %v721, 0.0
  %v764 = vmax.f32 %v724, 0.0
  %v765 = vmax.f32 %v729, 0.0
  %v766 = vmax.f32 %v732, 0.0
  %v767 = vpack.c.bf16 %v736, %v735
  %v768 = vpack.c.bf16 %v738, %v737
  %v769 = vpack.c.bf16 %v740, %v739
  %v770 = vpack.c.bf16 %v742, %v741
  %v771 = vpack.c.bf16 %v744, %v743
  %v772 = vpack.c.bf16 %v746, %v745
  %v773 = vpack.c.bf16 %v748, %v747
  %v774 = vpack.c.bf16 %v750, %v749
  %v775 = vpack.c.bf16 %v752, %v751
  %v776 = vpack.c.bf16 %v754, %v753
  %v777 = vpack.c.bf16 %v756, %v755
  %v778 = vpack.c.bf16 %v758, %v757
  %v779 = vpack.c.bf16 %v760, %v759
  %v780 = vpack.c.bf16 %v762, %v761
  %v781 = vpack.c.bf16 %v764, %v763
  %v782 = vpack.c.bf16 %v766, %v765
  %v783 = vld [vmem:[%s4] sm:$0xf]
  %v784 = vld [vmem:[%s4 + $0x4] sm:$0xf]
  %v785 = vld [vmem:[%s4 + $0x8] sm:$0xf]
  %v786 = vld [vmem:[%s4 + $0xc] sm:$0xf]
  %v787 = vld [vmem:[%s4 + $0x10] sm:$0xf]
  %v788 = vld [vmem:[%s4 + $0x14] sm:$0xf]
  %v789 = vld [vmem:[%s4 + $0x18] sm:$0xf]
  %v790 = vld [vmem:[%s4 + $0x1c] sm:$0xf]
  %v791 = vld [vmem:[%s4 + $0x20] sm:$0xf]
  %v792 = vld [vmem:[%s4 + $0x24] sm:$0xf]
  %v793 = vld [vmem:[%s4 + $0x28] sm:$0xf]
  %v794 = vld [vmem:[%s4 + $0x2c] sm:$0xf]
  %v795 = vld [vmem:[%s4 + $0x30] sm:$0xf]
  %v796 = vld [vmem:[%s4 + $0x34] sm:$0xf]
  %v797 = vld [vmem:[%s4 + $0x38] sm:$0xf]
  %v798 = vld [vmem:[%s4 + $0x3c] sm:$0xf]
  %v799 = vlaneseq
  %v800 = vshrl.u32 %v799, 7
  %v801 = vsub.s32 0, %v800
  %v802 = vrot.slane %v489, %v801
  %v819 = vunpack.c.l.b16 %v783
  %v820 = vunpack.c.l.b16 %v784
  %v821 = vunpack.c.l.b16 %v785
  %v822 = vunpack.c.l.b16 %v786
  %v823 = vunpack.c.l.b16 %v787
  %v824 = vunpack.c.l.b16 %v788
  %v825 = vunpack.c.l.b16 %v789
  %v826 = vunpack.c.l.b16 %v790
  %v827 = vunpack.c.l.b16 %v791
  %v828 = vunpack.c.l.b16 %v792
  %v829 = vunpack.c.l.b16 %v793
  %v830 = vunpack.c.l.b16 %v794
  %v831 = vunpack.c.l.b16 %v795
  %v832 = vunpack.c.l.b16 %v796
  %v833 = vunpack.c.l.b16 %v797
  %v834 = vunpack.c.l.b16 %v798
  %v835 = vpack.c.b16 %v820, %v819
  %v836 = vpack.c.b16 %v822, %v821
  %v837 = vpack.c.b16 %v824, %v823
  %v838 = vpack.c.b16 %v826, %v825
  %v839 = vpack.c.b16 %v828, %v827
  %v840 = vpack.c.b16 %v830, %v829
  %v841 = vpack.c.b16 %v832, %v831
  %v842 = vpack.c.b16 %v834, %v833
  %851 = vmatprep.subr.bf16.mxu0 0
  %852 = vmatpush1.bf16.msra.mxu0 %v835
  %853 = vmatprep.subr.bf16.mxu0 0
  %854 = vmatpush1.bf16.msra.mxu0 %v836
  %855 = vmatprep.subr.bf16.mxu0 0
  %856 = vmatpush1.bf16.msra.mxu0 %v837
  %857 = vmatprep.subr.bf16.mxu0 0
  %858 = vmatpush1.bf16.msra.mxu0 %v838
  %859 = vmatprep.subr.bf16.mxu0 0
  %860 = vmatpush1.bf16.msra.mxu0 %v839
  %861 = vmatprep.subr.bf16.mxu0 0
  %862 = vmatpush1.bf16.msra.mxu0 %v840
  %863 = vmatprep.subr.bf16.mxu0 0
  %864 = vmatpush1.bf16.msra.mxu0 %v841
  %865 = vmatprep.subr.bf16.mxu0 0
  %866 = vmatpush1.bf16.msra.mxu0 %v842
  %867 = vmatprep.subr.bf16.mxu0 0
  %868 = vmatpush1.bf16.msra.mxu0 0
  %869 = vmatprep.subr.bf16.mxu0 0
  %870 = vmatpush1.bf16.msra.mxu0 0
  %871 = vmatprep.subr.bf16.mxu0 0
  %872 = vmatpush1.bf16.msra.mxu0 0
  %873 = vmatprep.subr.bf16.mxu0 0
  %874 = vmatpush1.bf16.msra.mxu0 0
  %875 = vmatprep.subr.bf16.mxu0 0
  %876 = vmatpush1.bf16.msra.mxu0 0
  %877 = vmatprep.subr.bf16.mxu0 0
  %878 = vmatpush1.bf16.msra.mxu0 0
  %879 = vmatprep.subr.bf16.mxu0 0
  %880 = vmatpush1.bf16.msra.mxu0 0
  %881 = vmatprep.subr.bf16.mxu0 0
  %882 = vmatpush1.bf16.msra.mxu0 0
  %883 = vmatprep.mubr.bf16.mxu0 0
  %884 = vmatmul.mubr.bf16.gmra.mrb[0].mxu0 %v767
  %v885 = vpop.f32.mrb[0].mxu0
  %v886 = vadd.f32 %v802, %v885
  %v887 = vpop.f32.mrb[0].mxu0
  %v888 = vpop.f32.mrb[0].mxu0
  %v889 = vadd.f32 %v802, %v888
  %v890 = vpop.f32.mrb[0].mxu0
  %891 = vmatprep.mubr.bf16.mxu0 0
  %892 = vmatmul.mubr.bf16.gmra.mrb[0].mxu0 %v768
  %v893 = vpop.f32.mrb[0].mxu0
  %v894 = vadd.f32 %v802, %v893
  %v895 = vpop.f32.mrb[0].mxu0
  %v896 = vpop.f32.mrb[0].mxu0
  %v897 = vadd.f32 %v802, %v896
  %v898 = vpop.f32.mrb[0].mxu0
  %899 = vmatprep.mubr.bf16.mxu0 0
  %900 = vmatmul.mubr.bf16.gmra.mrb[0].mxu0 %v769
  %v901 = vpop.f32.mrb[0].mxu0
  %v902 = vadd.f32 %v802, %v901
  %v903 = vpop.f32.mrb[0].mxu0
  %v904 = vpop.f32.mrb[0].mxu0
  %v905 = vadd.f32 %v802, %v904
  %v906 = vpop.f32.mrb[0].mxu0
  %907 = vmatprep.mubr.bf16.mxu0 0
  %908 = vmatmul.mubr.bf16.gmra.mrb[0].mxu0 %v770
  %v909 = vpop.f32.mrb[0].mxu0
  %v910 = vadd.f32 %v802, %v909
  %v911 = vpop.f32.mrb[0].mxu0
  %v912 = vpop.f32.mrb[0].mxu0
  %v913 = vadd.f32 %v802, %v912
  %v914 = vpop.f32.mrb[0].mxu0
  %915 = vmatprep.mubr.bf16.mxu0 0
  %916 = vmatmul.mubr.bf16.gmra.mrb[0].mxu0 %v771
  %v917 = vpop.f32.mrb[0].mxu0
  %v918 = vadd.f32 %v802, %v917
  %v919 = vpop.f32.mrb[0].mxu0
  %v920 = vpop.f32.mrb[0].mxu0
  %v921 = vadd.f32 %v802, %v920
  %v922 = vpop.f32.mrb[0].mxu0
  %923 = vmatprep.mubr.bf16.mxu0 0
  %924 = vmatmul.mubr.bf16.gmra.mrb[0].mxu0 %v772
  %v925 = vpop.f32.mrb[0].mxu0
  %v926 = vadd.f32 %v802, %v925
  %v927 = vpop.f32.mrb[0].mxu0
  %v928 = vpop.f32.mrb[0].mxu0
  %v929 = vadd.f32 %v802, %v928
  %v930 = vpop.f32.mrb[0].mxu0
  %931 = vmatprep.mubr.bf16.mxu0 0
  %932 = vmatmul.mubr.bf16.gmra.mrb[0].mxu0 %v773
  %v933 = vpop.f32.mrb[0].mxu0
  %v934 = vadd.f32 %v802, %v933
  %v935 = vpop.f32.mrb[0].mxu0
  %v936 = vpop.f32.mrb[0].mxu0
  %v937 = vadd.f32 %v802, %v936
  %v938 = vpop.f32.mrb[0].mxu0
  %939 = vmatprep.mubr.bf16.mxu0 0
  %940 = vmatmul.mubr.bf16.gmra.mrb[0].mxu0 %v774
  %v941 = vpop.f32.mrb[0].mxu0
  %v942 = vadd.f32 %v802, %v941
  %v943 = vpop.f32.mrb[0].mxu0
  %v944 = vpop.f32.mrb[0].mxu0
  %v945 = vadd.f32 %v802, %v944
  %v946 = vpop.f32.mrb[0].mxu0
  %947 = vmatprep.mubr.bf16.mxu0 0
  %948 = vmatmul.mubr.bf16.gmra.mrb[0].mxu0 %v775
  %v949 = vpop.f32.mrb[0].mxu0
  %v950 = vadd.f32 %v802, %v949
  %v951 = vpop.f32.mrb[0].mxu0
  %v952 = vpop.f32.mrb[0].mxu0
  %v953 = vadd.f32 %v802, %v952
  %v954 = vpop.f32.mrb[0].mxu0
  %955 = vmatprep.mubr.bf16.mxu0 0
  %956 = vmatmul.mubr.bf16.gmra.mrb[0].mxu0 %v776
  %v957 = vpop.f32.mrb[0].mxu0
  %v958 = vadd.f32 %v802, %v957
  %v959 = vpop.f32.mrb[0].mxu0
  %v960 = vpop.f32.mrb[0].mxu0
  %v961 = vadd.f32 %v802, %v960
  %v962 = vpop.f32.mrb[0].mxu0
  %963 = vmatprep.mubr.bf16.mxu0 0
  %964 = vmatmul.mubr.bf16.gmra.mrb[0].mxu0 %v777
  %v965 = vpop.f32.mrb[0].mxu0
  %v966 = vadd.f32 %v802, %v965
  %v967 = vpop.f32.mrb[0].mxu0
  %v968 = vpop.f32.mrb[0].mxu0
  %v969 = vadd.f32 %v802, %v968
  %v970 = vpop.f32.mrb[0].mxu0
  %971 = vmatprep.mubr.bf16.mxu0 0
  %972 = vmatmul.mubr.bf16.gmra.mrb[0].mxu0 %v778
  %v973 = vpop.f32.mrb[0].mxu0
  %v974 = vadd.f32 %v802, %v973
  %v975 = vpop.f32.mrb[0].mxu0
  %v976 = vpop.f32.mrb[0].mxu0
  %v977 = vadd.f32 %v802, %v976
  %v978 = vpop.f32.mrb[0].mxu0
  %979 = vmatprep.mubr.bf16.mxu0 0
  %980 = vmatmul.mubr.bf16.gmra.mrb[0].mxu0 %v779
  %v981 = vpop.f32.mrb[0].mxu0
  %v982 = vadd.f32 %v802, %v981
  %v983 = vpop.f32.mrb[0].mxu0
  %v984 = vpop.f32.mrb[0].mxu0
  %v985 = vadd.f32 %v802, %v984
  %v986 = vpop.f32.mrb[0].mxu0
  %987 = vmatprep.mubr.bf16.mxu0 0
  %988 = vmatmul.mubr.bf16.gmra.mrb[0].mxu0 %v780
  %v989 = vpop.f32.mrb[0].mxu0
  %v990 = vadd.f32 %v802, %v989
  %v991 = vpop.f32.mrb[0].mxu0
  %v992 = vpop.f32.mrb[0].mxu0
  %v993 = vadd.f32 %v802, %v992
  %v994 = vpop.f32.mrb[0].mxu0
  %995 = vmatprep.mubr.bf16.mxu0 0
  %996 = vmatmul.mubr.bf16.gmra.mrb[0].mxu0 %v781
  %v997 = vpop.f32.mrb[0].mxu0
  %v998 = vadd.f32 %v802, %v997
  %v999 = vpop.f32.mrb[0].mxu0
  %v1000 = vpop.f32.mrb[0].mxu0
  %v1001 = vadd.f32 %v802, %v1000
  %v1002 = vpop.f32.mrb[0].mxu0
  %1003 = vmatprep.mubr.bf16.mxu0 0
  %1004 = vmatmul.mubr.bf16.gmra.mrb[0].mxu0 %v782
  %v1005 = vpop.f32.mrb[0].mxu0
  %v1006 = vadd.f32 %v802, %v1005
  %v1007 = vpop.f32.mrb[0].mxu0
  %v1008 = vpop.f32.mrb[0].mxu0
  %v1009 = vadd.f32 %v802, %v1008
  %v1010 = vpop.f32.mrb[0].mxu0
  %1011 = vdwg.mxu0
  %1012 = vst [vmem:[%s5] sm:$0xff] %v886
  %1013 = vst [vmem:[%s5 + $0x8] sm:$0xff] %v889
  %1014 = vst [vmem:[%s5 + $0x10] sm:$0xff] %v894
  %1015 = vst [vmem:[%s5 + $0x18] sm:$0xff] %v897
  %1016 = vst [vmem:[%s5 + $0x20] sm:$0xff] %v902
  %1017 = vst [vmem:[%s5 + $0x28] sm:$0xff] %v905
  %1018 = vst [vmem:[%s5 + $0x30] sm:$0xff] %v910
  %1019 = vst [vmem:[%s5 + $0x38] sm:$0xff] %v913
  %1020 = vst [vmem:[%s5 + $0x40] sm:$0xff] %v918
  %1021 = vst [vmem:[%s5 + $0x48] sm:$0xff] %v921
  %1022 = vst [vmem:[%s5 + $0x50] sm:$0xff] %v926
  %1023 = vst [vmem:[%s5 + $0x58] sm:$0xff] %v929
  %1024 = vst [vmem:[%s5 + $0x60] sm:$0xff] %v934
  %1025 = vst [vmem:[%s5 + $0x68] sm:$0xff] %v937
  %1026 = vst [vmem:[%s5 + $0x70] sm:$0xff] %v942
  %1027 = vst [vmem:[%s5 + $0x78] sm:$0xff] %v945
  %1028 = vst [vmem:[%s5 + $0x80] sm:$0xff] %v950
  %1029 = vst [vmem:[%s5 + $0x88] sm:$0xff] %v953
  %1030 = vst [vmem:[%s5 + $0x90] sm:$0xff] %v958
  %1031 = vst [vmem:[%s5 + $0x98] sm:$0xff] %v961
  %1032 = vst [vmem:[%s5 + $0xa0] sm:$0xff] %v966
  %1033 = vst [vmem:[%s5 + $0xa8] sm:$0xff] %v969
  %1034 = vst [vmem:[%s5 + $0xb0] sm:$0xff] %v974
  %1035 = vst [vmem:[%s5 + $0xb8] sm:$0xff] %v977
  %1036 = vst [vmem:[%s5 + $0xc0] sm:$0xff] %v982
  %1037 = vst [vmem:[%s5 + $0xc8] sm:$0xff] %v985
  %1038 = vst [vmem:[%s5 + $0xd0] sm:$0xff] %v990
  %1039 = vst [vmem:[%s5 + $0xd8] sm:$0xff] %v993
  %1040 = vst [vmem:[%s5 + $0xe0] sm:$0xff] %v998
  %1041 = vst [vmem:[%s5 + $0xe8] sm:$0xff] %v1001
  %1042 = vst [vmem:[%s5 + $0xf0] sm:$0xff] %v1006
  %1043 = vst [vmem:[%s5 + $0xf8] sm:$0xff] %v1009
  // Predicated region
  $region22: #{_lambda_.1} parent=0 // pred_check
    _
  $region23: #{_lambda_.1} parent=0 // pred_check_branch
    %1045 = sbr.rel (0) target = $region25
  $region24: #{_lambda_.1} parent=0 // pred_region
    _
  $region25: #{_lambda_.1} parent=0 // pred_fallthru
    _
  // Predicated region
  $region26: #{_lambda_.1} parent=0 // pred_check
    _
  $region27: #{_lambda_.1} parent=0 // pred_check_branch
    %1047 = sbr.rel (0) target = $region29
  $region28: #{_lambda_.1} parent=0 // pred_region
    _
  $region29: #{_lambda_.1} parent=0 // pred_fallthru
    _

</llo_original>
